<compile_context>
chip_gen: v5e
topology: v5e:2x2
jax: 0.10.0
libtpu: 0.0.40
codegen_flags: <defaults>
</compile_context>

<pallas_src>
import functools

import jax
import jax.numpy as jnp
from jax.experimental import pallas as pl
from jax.experimental.pallas import tpu as pltpu


def _round_up(x, m):
    return ((x + m - 1) // m) * m


def _embeddings_kernel(pre_ref, ent_ref, w_ref, gamma_ref, beta_ref, o_ref, *, eps):
    # pre_ref: [tn, H]   = (word+pos+type)*(1-kb) + kb*proj_b   (compute dtype)
    # ent_ref: [tn, Dp]  = entity_emb(ids) * kb, D zero-padded   (compute dtype)
    # w_ref:   [Dp, H]   = entity_proj weight, pre-transposed to [K, N]
    # Canonical [M,K]@[K,N] matmul on the MXU with f32 accumulation.
    node = jnp.dot(ent_ref[...], w_ref[...], preferred_element_type=jnp.float32)
    x = pre_ref[...].astype(jnp.float32) + node

    # LayerNorm over the hidden axis (f32 statistics).
    mean = jnp.mean(x, axis=-1, keepdims=True)
    var = jnp.mean((x - mean) ** 2, axis=-1, keepdims=True)
    y = (x - mean) * jax.lax.rsqrt(var + eps)
    y = y * gamma_ref[...] + beta_ref[...]

    # TODO(synk): dropout is identity in eval mode; training-mode dropout omitted.
    o_ref[...] = y.astype(o_ref.dtype)


def prepare_params(params, compute_dtype=jnp.bfloat16):
    """One-time parameter preparation (run once at load time, not per step):
       * cast embedding tables / projection weight to the compute dtype,
       * zero-pad the entity dim to a multiple of 128 (lane alignment),
       * pre-transpose proj_w to [D_pad, H]."""
    H = params["word_emb"].shape[-1]
    D = params["entity_emb"].shape[-1]
    D_pad = max(_round_up(D, 128), 128)

    ent_tbl = params["entity_emb"].astype(compute_dtype)
    w = params["proj_w"].astype(compute_dtype)                  # [H, D]
    if D_pad != D:
        ent_tbl = jnp.pad(ent_tbl, ((0, 0), (0, D_pad - D)))
        w = jnp.pad(w, ((0, 0), (0, D_pad - D)))
    w_t = jnp.transpose(w)                                      # [D_pad, H]

    return {
        "word_emb": params["word_emb"].astype(compute_dtype),
        "pos_emb": params["pos_emb"].astype(compute_dtype),
        "type_emb": params["type_emb"].astype(compute_dtype),
        "entity_emb": ent_tbl,                                  # [E, D_pad]
        "proj_w_t": w_t,                                        # [D_pad, H]
        "proj_b": params["proj_b"].astype(jnp.float32),
        "ln_gamma": params["ln_gamma"].astype(jnp.float32).reshape(1, H),
        "ln_beta": params["ln_beta"].astype(jnp.float32).reshape(1, H),
    }


def gatbert_embeddings_forward(prepared, input_ids, kb_mask,
                               position_ids=None, token_type_ids=None,
                               *, eps=1e-12, row_tile=512):
    """Glue: gathers / pre-sum in JAX (XLA fuses them), fused matmul+LayerNorm
    in Pallas.  `prepared` comes from prepare_params()."""
    B, S = input_ids.shape
    D_pad, H = prepared["proj_w_t"].shape
    compute_dtype = prepared["word_emb"].dtype
    N = B * S

    # Masks (same semantics as the PyTorch module).
    not_kb = jnp.where(kb_mask > 0, 0, 1).astype(input_ids.dtype)
    token_ids = input_ids * not_kb
    entity_ids = input_ids * kb_mask.astype(input_ids.dtype)

    kb_f = kb_mask.astype(jnp.float32)[..., None]               # [B,S,1]
    not_kb_f = not_kb.astype(jnp.float32)[..., None]            # [B,S,1]

    # Token path: gather + add (fused by XLA); skip absent streams entirely.
    tok = jnp.take(prepared["word_emb"], token_ids, axis=0)                 # [B,S,H]
    if position_ids is not None:
        tok = tok + jnp.take(prepared["pos_emb"], position_ids, axis=0)
    if token_type_ids is not None:
        tok = tok + jnp.take(prepared["type_emb"], token_type_ids, axis=0)

    # Pre-mask token path and fold in the kb-masked projection bias; pre-mask
    # the entity path by kb.  XLA fuses these elementwise ops into the gathers.
    pre = (tok.astype(jnp.float32) * not_kb_f
           + kb_f * prepared["proj_b"]).astype(compute_dtype)               # [B,S,H]
    ent = (jnp.take(prepared["entity_emb"], entity_ids, axis=0).astype(jnp.float32)
           * kb_f).astype(compute_dtype)                                    # [B,S,D_pad]

    pre = pre.reshape(N, H)
    ent = ent.reshape(N, D_pad)

    # Tile selection: keep >=2 grid steps when there is enough work (v7x has
    # two TensorCores) and never let the block exceed the row count.
    tn = row_tile
    while tn > 256 and pl.cdiv(N, tn) < 2:
        tn //= 2
    if N < tn:
        tn = N if N < 8 else (N // 8) * 8
    n_tiles = pl.cdiv(N, tn)
    # No jnp.pad: the ragged last block (if any) is masked by Pallas.  Its
    # garbage rows go through LN but the corresponding stores are dropped.

    row_h = pl.BlockSpec((tn, H), lambda i: (i, 0))
    row_d = pl.BlockSpec((tn, D_pad), lambda i: (i, 0))
    full_w = pl.BlockSpec((D_pad, H), lambda i: (0, 0))
    full_h = pl.BlockSpec((1, H), lambda i: (0, 0))

    out = pl.pallas_call(
        functools.partial(_embeddings_kernel, eps=eps),
        out_shape=jax.ShapeDtypeStruct((N, H), compute_dtype),
        grid_spec=pltpu.PrefetchScalarGridSpec(
            num_scalar_prefetch=0,
            grid=(n_tiles,),
            in_specs=[row_h, row_d, full_w, full_h, full_h],
            out_specs=row_h,
        ),
        compiler_params=pltpu.CompilerParams(
            dimension_semantics=("parallel",),
            # Above the default scoped limits (16/32 MiB) yet safely under
            # v7x's 64 MiB physical VMEM so the same kernel runs on v5e/v6e/v7x.
            vmem_limit_bytes=48 * 1024 * 1024),
    )(pre, ent, prepared["proj_w_t"], prepared["ln_gamma"], prepared["ln_beta"])

    return out.reshape(B, S, H)


def init_params(key, vocab_size, hidden_size, max_pos, type_vocab,
                entity_vocab, entity_dim, pad_token_id=0):
    ks = jax.random.split(key, 6)
    word_emb = jax.random.normal(ks[0], (vocab_size, hidden_size), jnp.float32) * 0.02
    word_emb = word_emb.at[pad_token_id].set(0.0)  # padding_idx row zeroed
    return {
        "word_emb": word_emb,
        "pos_emb": jax.random.normal(ks[1], (max_pos, hidden_size), jnp.float32) * 0.02,
        "type_emb": jax.random.normal(ks[2], (type_vocab, hidden_size), jnp.float32) * 0.02,
        "entity_emb": jax.random.normal(ks[3], (entity_vocab, entity_dim), jnp.float32) * 0.02,
        "proj_w": jax.random.normal(ks[4], (hidden_size, entity_dim), jnp.float32) * 0.02,
        "proj_b": jax.random.normal(ks[5], (hidden_size,), jnp.float32) * 0.02,
        "ln_gamma": jnp.ones((hidden_size,), jnp.float32),
        "ln_beta": jnp.zeros((hidden_size,), jnp.float32),
    }


def _reference(params, input_ids, kb_mask, position_ids, token_type_ids, eps=1e-12):
    not_kb = jnp.where(kb_mask > 0, 0, 1)
    token_ids = input_ids * not_kb
    tok = jnp.take(params["word_emb"], token_ids, axis=0)
    tok = tok + jnp.take(params["pos_emb"], position_ids, axis=0)
    tok = tok + jnp.take(params["type_emb"], token_type_ids, axis=0)
    tok = tok * not_kb[..., None]
    node = jnp.take(params["entity_emb"], input_ids * kb_mask, axis=0)
    node = node @ params["proj_w"].T + params["proj_b"]
    node = node * kb_mask[..., None]
    x = tok + node
    mean = jnp.mean(x, axis=-1, keepdims=True)
    var = jnp.mean((x - mean) ** 2, axis=-1, keepdims=True)
    return (x - mean) * jax.lax.rsqrt(var + eps) * params["ln_gamma"] + params["ln_beta"]


if __name__ == "__main__":
    # Small synthetic config (correctness only; not a perf shape).
    B, S = 2, 8
    vocab_size, hidden_size = 64, 32
    max_pos, type_vocab = 16, 2
    entity_vocab, entity_dim = 48, 64
    pad_token_id = 0

    key = jax.random.PRNGKey(0)
    pkey, k1, k2, k3 = jax.random.split(key, 4)
    params = init_params(pkey, vocab_size, hidden_size, max_pos, type_vocab,
                         entity_vocab, entity_dim, pad_token_id)

    input_ids = jax.random.randint(k1, (B, S), 1, min(vocab_size, entity_vocab), jnp.int32)
    kb_mask = jax.random.randint(k2, (B, S), 0, 2, jnp.int32)
    position_ids = jnp.tile(jnp.arange(S, dtype=jnp.int32)[None, :], (B, 1))
    token_type_ids = jax.random.randint(k3, (B, S), 0, type_vocab, jnp.int32)

    ref = _reference(params, input_ids, kb_mask, position_ids, token_type_ids)

    # f32 path: tight correctness check of the kernel math.
    prep_f32 = prepare_params(params, compute_dtype=jnp.float32)
    out_f32 = gatbert_embeddings_forward(prep_f32, input_ids, kb_mask,
                                         position_ids, token_type_ids)
    out_f32 = jax.block_until_ready(out_f32)
    assert out_f32.shape == (B, S, hidden_size)
    assert jnp.allclose(out_f32, ref, atol=1e-4, rtol=1e-4), "f32 mismatch vs reference"

    # bf16 fast path (default): halves HBM traffic for tables + row streams.
    prep_bf16 = prepare_params(params, compute_dtype=jnp.bfloat16)
    out_bf16 = gatbert_embeddings_forward(prep_bf16, input_ids, kb_mask,
                                          position_ids, token_type_ids)
    out_bf16 = jax.block_until_ready(out_bf16)
    assert out_bf16.shape == (B, S, hidden_size)
    assert jnp.allclose(out_bf16.astype(jnp.float32), ref, atol=5e-2, rtol=5e-2), \
        "bf16 mismatch vs reference"

    print("KERNEL_OK")
</pallas_src>

<mosaic_0001>
module attributes {stable_mosaic.version = 11 : i64} {
  func.func @_embeddings_kernel(%arg0: i32, %arg1: memref<16x32xf32, #tpu.memory_space<vmem>>, %arg2: memref<16x128xf32, #tpu.memory_space<vmem>>, %arg3: memref<128x32xf32, #tpu.memory_space<vmem>>, %arg4: memref<1x32xf32, #tpu.memory_space<vmem>>, %arg5: memref<1x32xf32, #tpu.memory_space<vmem>>, %arg6: memref<16x32xf32, #tpu.memory_space<vmem>>) attributes {dimension_semantics = [#tpu.dimension_semantics<parallel>], iteration_bounds = array<i64: 1>, scalar_prefetch = 0 : i64, scratch_operands = 0 : i64, tpu.core_type = #tpu.core_type<tc>, window_params = [{transform_indices = @transform_0, window_bounds = array<i64: 16, 32>}, {transform_indices = @transform_1, window_bounds = array<i64: 16, 128>}, {pipeline_mode = #tpu.pipeline_mode<synchronous>, transform_indices = @transform_2, window_bounds = array<i64: 128, 32>}, {pipeline_mode = #tpu.pipeline_mode<synchronous>, transform_indices = @transform_3, window_bounds = array<i64: 1, 32>}, {pipeline_mode = #tpu.pipeline_mode<synchronous>, transform_indices = @transform_4, window_bounds = array<i64: 1, 32>}, {transform_indices = @transform_5, window_bounds = array<i64: 16, 32>}]} {
    %c0 = arith.constant 0 : index
    %c0_0 = arith.constant 0 : index
    %0 = vector.load %arg2[%c0, %c0_0] : memref<16x128xf32, #tpu.memory_space<vmem>>, vector<16x128xf32>
    %c0_1 = arith.constant 0 : index
    %c0_2 = arith.constant 0 : index
    %1 = vector.load %arg3[%c0_1, %c0_2] : memref<128x32xf32, #tpu.memory_space<vmem>>, vector<128x32xf32>
    %cst = arith.constant dense<0.000000e+00> : vector<16x32xf32>
    %2 = tpu.matmul %0, %1, %cst {dimension_numbers = #tpu.dot_dimension_numbers<[1], [0], [0], [1], [0, 0, 1, 1], [], []>} : vector<16x128xf32>, vector<128x32xf32>, vector<16x32xf32> -> vector<16x32xf32>
    %c0_3 = arith.constant 0 : index
    %c0_4 = arith.constant 0 : index
    %3 = vector.load %arg1[%c0_3, %c0_4] : memref<16x32xf32, #tpu.memory_space<vmem>>, vector<16x32xf32>
    %4 = arith.addf %3, %2 : vector<16x32xf32>
    %cst_5 = arith.constant dense<0.000000e+00> : vector<16xf32>
    %5 = vector.multi_reduction <add>, %4, %cst_5 [1] : vector<16x32xf32> to vector<16xf32>
    %6 = vector.shape_cast %5 : vector<16xf32> to vector<16x1xf32>
    %cst_6 = arith.constant 3.200000e+01 : f32
    %7 = vector.broadcast %cst_6 : f32 to vector<16x1xf32>
    %8 = arith.divf %6, %7 : vector<16x1xf32>
    %9 = vector.broadcast %8 : vector<16x1xf32> to vector<16x32xf32>
    %10 = arith.subf %4, %9 : vector<16x32xf32>
    %11 = arith.mulf %10, %10 : vector<16x32xf32>
    %cst_7 = arith.constant dense<0.000000e+00> : vector<16xf32>
    %12 = vector.multi_reduction <add>, %11, %cst_7 [1] : vector<16x32xf32> to vector<16xf32>
    %13 = vector.shape_cast %12 : vector<16xf32> to vector<16x1xf32>
    %cst_8 = arith.constant 3.200000e+01 : f32
    %14 = vector.broadcast %cst_8 : f32 to vector<16x1xf32>
    %15 = arith.divf %13, %14 : vector<16x1xf32>
    %16 = vector.broadcast %8 : vector<16x1xf32> to vector<16x32xf32>
    %17 = arith.subf %4, %16 : vector<16x32xf32>
    %cst_9 = arith.constant 9.99999996E-13 : f32
    %18 = vector.broadcast %cst_9 : f32 to vector<16x1xf32>
    %19 = arith.addf %15, %18 : vector<16x1xf32>
    %20 = math.rsqrt %19 : vector<16x1xf32>
    %21 = vector.broadcast %20 : vector<16x1xf32> to vector<16x32xf32>
    %22 = arith.mulf %17, %21 : vector<16x32xf32>
    %c0_10 = arith.constant 0 : index
    %c0_11 = arith.constant 0 : index
    %23 = vector.load %arg4[%c0_10, %c0_11] : memref<1x32xf32, #tpu.memory_space<vmem>>, vector<1x32xf32>
    %24 = vector.broadcast %23 : vector<1x32xf32> to vector<16x32xf32>
    %25 = arith.mulf %22, %24 : vector<16x32xf32>
    %c0_12 = arith.constant 0 : index
    %c0_13 = arith.constant 0 : index
    %26 = vector.load %arg5[%c0_12, %c0_13] : memref<1x32xf32, #tpu.memory_space<vmem>>, vector<1x32xf32>
    %27 = vector.broadcast %26 : vector<1x32xf32> to vector<16x32xf32>
    %28 = arith.addf %25, %27 : vector<16x32xf32>
    %c0_14 = arith.constant 0 : index
    %c0_15 = arith.constant 0 : index
    %29 = vector.load %arg6[%c0_14, %c0_15] : memref<16x32xf32, #tpu.memory_space<vmem>>, vector<16x32xf32>
    tpu.vector_store %arg6[%c0_14, %c0_15], %28 {strides = array<i32>} : memref<16x32xf32, #tpu.memory_space<vmem>>, vector<16x32xf32>,
    return
  }
  func.func @transform_0(%arg0: i32) -> (i32, i32) {
    %c0_i32 = arith.constant 0 : i32
    %c0_i32_0 = arith.constant 0 : i32
    return %arg0, %c0_i32 : i32, i32
  }
  func.func @transform_1(%arg0: i32) -> (i32, i32) {
    %c0_i32 = arith.constant 0 : i32
    %c0_i32_0 = arith.constant 0 : i32
    return %arg0, %c0_i32 : i32, i32
  }
  func.func @transform_2(%arg0: i32) -> (i32, i32) {
    %c0_i32 = arith.constant 0 : i32
    %c0_i32_0 = arith.constant 0 : i32
    %c0_i32_1 = arith.constant 0 : i32
    return %c0_i32, %c0_i32_0 : i32, i32
  }
  func.func @transform_3(%arg0: i32) -> (i32, i32) {
    %c0_i32 = arith.constant 0 : i32
    %c0_i32_0 = arith.constant 0 : i32
    %c0_i32_1 = arith.constant 0 : i32
    return %c0_i32, %c0_i32_0 : i32, i32
  }
  func.func @transform_4(%arg0: i32) -> (i32, i32) {
    %c0_i32 = arith.constant 0 : i32
    %c0_i32_0 = arith.constant 0 : i32
    %c0_i32_1 = arith.constant 0 : i32
    return %c0_i32, %c0_i32_0 : i32, i32
  }
  func.func @transform_5(%arg0: i32) -> (i32, i32) {
    %c0_i32 = arith.constant 0 : i32
    %c0_i32_0 = arith.constant 0 : i32
    return %arg0, %c0_i32 : i32, i32
  }
}

</mosaic_0001>

<llo_original>
// kernel: tpu_custom_call.1
$region0: #{tpu_custom_call.1}
  #allocation0 [shape = 'u32[]', space=smem, size = 0x4, offset = 0x4, fixed_abs, tag = 'smem constant byte address 0x4 - core index']
  #allocation1 [shape = 'u32[72,128]{1,0:T(1,128)}', space=vmem, size = 0x9000, scoped, tag = 'internal scratch']
  %s0 = inlined_call_operand.vmem [shape: f32[16,32], index: 0, kind: input, shape index: {}]
  %s1 = inlined_call_operand.vmem [shape: f32[16,128], index: 1, kind: input, shape index: {}]
  %s2 = inlined_call_operand.vmem [shape: f32[128,32], index: 2, kind: input, shape index: {}]
  %s3 = inlined_call_operand.vmem [shape: f32[1,32], index: 3, kind: input, shape index: {}]
  %s4 = inlined_call_operand.vmem [shape: f32[1,32], index: 4, kind: input, shape index: {}]
  %s5 = inlined_call_operand.hbm [shape: f32[16,32], index: 5, kind: output, shape index: {}]
  %s6 = sld [smem:[#allocation0]]
  $region30: #{tpu_custom_call.1} parent=0
    _
  %s8 = ssub.s32 1, %s6
  %s9 = scalar_select 0, %s8, %s6
  $region1: #{tpu_custom_call.1} parent=0
    #allocation2 [shape = 'u8[8192]{0}', space=vmem, size = 0x2000, scoped, tag = 'output window, operand 0, single buffered']
    #allocation3 [shape = 's32[1]{0}', space=sflag, size = 0x4, scoped, tag = 'scoped memory for tpu_custom_call.1']
    %10 = vsyncpa [#allocation3], 0
    // Predicated region
    $region2: #{tpu_custom_call.1} parent=1 // pred_check
      _
    $region3: #{tpu_custom_call.1} parent=1 // pred_check_branch
      %12 = sbr.rel (0) target = $region5
    $region4: #{tpu_custom_call.1} parent=1 // pred_region
      _
    $region5: #{tpu_custom_call.1} parent=1 // pred_fallthru
      _
    // Predicated region
    $region6: #{tpu_custom_call.1} parent=1 // pred_check
      _
    $region7: #{tpu_custom_call.1} parent=1 // pred_check_branch
      %14 = sbr.rel (0) target = $region9
    $region8: #{tpu_custom_call.1} parent=1 // pred_region
      _
    $region9: #{tpu_custom_call.1} parent=1 // pred_fallthru
      _
    // Predicated region
    $region10: #{tpu_custom_call.1} parent=1 // pred_check
      _
    $region11: #{tpu_custom_call.1} parent=1 // pred_check_branch
      %16 = sbr.rel (0) target = $region13
    $region12: #{tpu_custom_call.1} parent=1 // pred_region
      _
    $region13: #{tpu_custom_call.1} parent=1 // pred_fallthru
      _
    // Predicated region
    $region14: #{tpu_custom_call.1} parent=1 // pred_check
      _
    $region15: #{tpu_custom_call.1} parent=1 // pred_check_branch
      %18 = sbr.rel (0) target = $region17
    $region16: #{tpu_custom_call.1} parent=1 // pred_region
      _
    $region17: #{tpu_custom_call.1} parent=1 // pred_fallthru
      _
    // Predicated region
    $region18: #{tpu_custom_call.1} parent=1 // pred_check
      _
    $region19: #{tpu_custom_call.1} parent=1 // pred_check_branch
      %20 = sbr.rel (0) target = $region21
    $region20: #{tpu_custom_call.1} parent=1 // pred_region
      _
    $region21: #{tpu_custom_call.1} parent=1 // pred_fallthru
      _
    %v21 = vld [vmem:[%s1] sm:$0xff]
    %v22 = vld [vmem:[%s1 + $0x8] sm:$0xff]
    %v23 = vld [vmem:[%s2] sm:$0xff]
    %v24 = vld [vmem:[%s2 + $0x8] sm:$0xff]
    %v25 = vld [vmem:[%s2 + $0x10] sm:$0xff]
    %v26 = vld [vmem:[%s2 + $0x18] sm:$0xff]
    %v27 = vld [vmem:[%s2 + $0x20] sm:$0xff]
    %v28 = vld [vmem:[%s2 + $0x28] sm:$0xff]
    %v29 = vld [vmem:[%s2 + $0x30] sm:$0xff]
    %v30 = vld [vmem:[%s2 + $0x38] sm:$0xff]
    %v31 = vld [vmem:[%s2 + $0x40] sm:$0xff]
    %v32 = vld [vmem:[%s2 + $0x48] sm:$0xff]
    %v33 = vld [vmem:[%s2 + $0x50] sm:$0xff]
    %v34 = vld [vmem:[%s2 + $0x58] sm:$0xff]
    %v35 = vld [vmem:[%s2 + $0x60] sm:$0xff]
    %v36 = vld [vmem:[%s2 + $0x68] sm:$0xff]
    %v37 = vld [vmem:[%s2 + $0x70] sm:$0xff]
    %v38 = vld [vmem:[%s2 + $0x78] sm:$0xff]
    %39 = vmatpush.msra.mxu0 %v38
    %40 = vmatpush.msra.mxu0 %v37
    %41 = vmatpush.msra.mxu0 %v36
    %42 = vmatpush.msra.mxu0 %v35
    %43 = vmatpush.msra.mxu0 %v34
    %44 = vmatpush.msra.mxu0 %v33
    %45 = vmatpush.msra.mxu0 %v32
    %46 = vmatpush.msra.mxu0 %v31
    %47 = vmatpush.msra.mxu0 %v30
    %48 = vmatpush.msra.mxu0 %v29
    %49 = vmatpush.msra.mxu0 %v28
    %50 = vmatpush.msra.mxu0 %v27
    %51 = vmatpush.msra.mxu0 %v26
    %52 = vmatpush.msra.mxu0 %v25
    %53 = vmatpush.msra.mxu0 %v24
    %54 = vmatpush.msra.mxu0 %v23
    %55 = vmatmul.f32.gmra.mxu0 %v21
    %v56 = vpop.f32.mrf.mxu0
    %v57 = vadd.f32 0.0, %v56
    %58 = vmatmul.f32.gmra.mxu0 %v22
    %v59 = vpop.f32.mrf.mxu0
    %v60 = vadd.f32 0.0, %v59
    %61 = vdwg.mxu0
    %v62 = vld [vmem:[%s0] sm:$0xff]
    %v63 = vld [vmem:[%s0 + $0x8] sm:$0xff]
    %v64 = vadd.f32 %v62, %v57
    %v65 = vadd.f32 %v63, %v60
    %vm66 = vcmask 261120
    %v67 = vsel %vm66, %v64, 0.0
    %68 = vadd.xlane.f32.xlu0 %v67
    %v69 = vpop.xlane.xlu0 %68
    %v70 = vsel %vm66, %v65, 0.0
    %71 = vadd.xlane.f32.xlu0 %v70
    %v72 = vpop.xlane.xlu0 %71
    %v73 = vrcp.pop 32.0
    %v74 = vmul.f32 32.0, %v73
    %v75 = vsub.f32 1.0, %v74
    %v76 = vmul.f32 %v73, %v75
    %v77 = vadd.f32 %v73, %v76
    %vm78 = vweird.f32 %v73
    %v79 = vsel %vm78, %v73, %v77
    %v80 = vmul.f32 %v69, %v79
    %v81 = vmul.f32 %v72, %v79
    %v82 = vsub.f32 %v64, %v80
    %v83 = vsub.f32 %v65, %v81
    %v84 = vmul.f32 %v82, %v82
    %v85 = vmul.f32 %v83, %v83
    %v86 = vsel %vm66, %v84, 0.0
    %87 = vadd.xlane.f32.xlu0 %v86
    %v88 = vpop.xlane.xlu0 %87
    %v89 = vsel %vm66, %v85, 0.0
    %90 = vadd.xlane.f32.xlu0 %v89
    %v91 = vpop.xlane.xlu0 %90
    %v92 = vmul.f32 %v88, %v79
    %v93 = vmul.f32 %v91, %v79
    %v94 = vadd.f32 %v92, 1e-12
    %v95 = vadd.f32 %v93, 1e-12
    %v96 = vrsqrt.pop %v94
    %v97 = vmul.f32 %v96, %v94
    %v98 = vmul.f32 %v97, %v96
    %v99 = vmul.f32 0.5, %v98
    %v100 = vsub.f32 1.5, %v99
    %v101 = vmul.f32 %v96, %v100
    %vm102 = vweird.f32 %v94
    %vm103 = vweird.f32 %v96
    %vm104 = vmor %vm102, %vm103
    %v105 = vsel %vm104, %v96, %v101
    %v106 = vrsqrt.pop %v95
    %v107 = vmul.f32 %v106, %v95
    %v108 = vmul.f32 %v107, %v106
    %v109 = vmul.f32 0.5, %v108
    %v110 = vsub.f32 1.5, %v109
    %v111 = vmul.f32 %v106, %v110
    %vm112 = vweird.f32 %v95
    %vm113 = vweird.f32 %v106
    %vm114 = vmor %vm112, %vm113
    %v115 = vsel %vm114, %v106, %v111
    %v116 = vmul.f32 %v82, %v105
    %v117 = vmul.f32 %v83, %v115
    %v118 = vld [vmem:[%s3] sm:$0x1]
    %v120 = vperm.slane %v118, 0
    %v122 = vmul.f32 %v116, %v120
    %v123 = vmul.f32 %v117, %v120
    %v124 = vld [vmem:[%s4] sm:$0x1]
    %v126 = vperm.slane %v124, 0
    %v128 = vadd.f32 %v122, %v126
    %v129 = vadd.f32 %v123, %v126
    %130 = vst.msk [vmem:[#allocation2] sm:$0xff] %vm66, %v128
    %131 = vst.msk [vmem:[#allocation2 + $0x8] sm:$0xff] %vm66, %v129
    // Predicated region
    $region22: #{tpu_custom_call.1} parent=1 // pred_check
      _
    $region23: #{tpu_custom_call.1} parent=1 // pred_check_branch
      %133 = sbr.rel (0) target = $region25
    $region24: #{tpu_custom_call.1} parent=1 // pred_region
      %135 = vsyncadd [#allocation3], 0
      %s136 = sshll.u32 [#allocation2], 4
      %s137 = int_to_ptr.vmem [resolvable:$true] %s136
      %s138 = sshll.u32 %s5, 4
      %s139 = int_to_ptr.hbm [resolvable:$true] %s138
      %144 = dma.vmem_to_hbm [thread:$0]  %s137, 256, %s139, [#allocation3], 128, 128, 8
    $region25: #{tpu_custom_call.1} parent=1 // pred_fallthru
      _
    // Predicated region
    $region26: #{tpu_custom_call.1} parent=1 // pred_check
      _
    $region27: #{tpu_custom_call.1} parent=1 // pred_check_branch
      %146 = sbr.rel (0) target = $region29
    $region28: #{tpu_custom_call.1} parent=1 // pred_region
      %148 = dma.done [#allocation3], 256
    $region29: #{tpu_custom_call.1} parent=1 // pred_fallthru
      _
    %149 = vsyncpa [#allocation3], 1

</llo_original>
